<compile_context>
chip_gen: v6e
topology: v6e:2x2x1
jax: 0.10.0
libtpu: 0.0.40
codegen_flags: <defaults>
</compile_context>

<pallas_src>
import functools

import jax
import jax.numpy as jnp
from jax.experimental import pallas as pl
from jax.experimental.pallas import tpu as pltpu

_SQRT_2_OVER_PI = 0.7978845608028654          # sqrt(2 / pi)
_K1 = _SQRT_2_OVER_PI
_K2 = 0.044715 * _SQRT_2_OVER_PI              # folded: u = x*(K1 + K2*x^2)
_LANES = 128
_BLOCK_BYTES = 2 << 20                        # ~2 MiB per block (per buffer)
_MIN_SPLIT_ROWS = 1024                        # min rows per half for forced split


def _gelu_kernel(x_ref, o_ref, *, compute_dtype):
    # Upcast (default f32): deterministic codegen on v5e (no bf16 VPU/EUP) and
    # matches PyTorch accuracy; the kernel is DMA-bound so the cast is free.
    x = x_ref[...].astype(compute_dtype)
    x2 = x * x
    u = x * (_K1 + _K2 * x2)          # == sqrt(2/pi) * (x + 0.044715*x^3)
    t = jnp.tanh(u)                   # EUP slot
    h = 0.5 * x
    o_ref[...] = (h + h * t).astype(o_ref.dtype)   # 0.5*x*(1 + tanh(u))


def _round_up(v: int, m: int) -> int:
    return -(-v // m) * m


def _row_align(dtype) -> int:
    # Native sublane packing: 8 rows for 32-bit, 16 for 16-bit, 32 for 8-bit.
    itemsize = jnp.dtype(dtype).itemsize
    return 8 * max(1, 4 // max(itemsize, 1))


def _pick_tile_rows(rows: int, align: int, max_rows: int) -> int:
    """Rows per block.

    - Fits one block: keep it as a single full-dim block (exempt from the
      8-row rule), unless each half would still be >= _MIN_SPLIT_ROWS — then
      split 2-way so dual-TC v7x shards the "parallel" axis.  On single-TC
      v5e/v6e the grid is a sequential loop, so small splits are skipped.
    - Needs multiple blocks: balance them so the last block isn't ragged-tiny.
    """
    if rows <= max_rows:
        if rows >= 2 * _MIN_SPLIT_ROWS:
            return min(max_rows, _round_up(pl.cdiv(rows, 2), align))
        return rows
    n_blocks = pl.cdiv(rows, max_rows)
    return _round_up(pl.cdiv(rows, n_blocks), align)


def _launch(x2d: jax.Array, tile_rows: int, compute_dtype) -> jax.Array:
    rows, cols = x2d.shape
    n = x2d.size
    itemsize = jnp.dtype(x2d.dtype).itemsize
    kernel = functools.partial(_gelu_kernel, compute_dtype=compute_dtype)
    return pl.pallas_call(
        kernel,
        out_shape=jax.ShapeDtypeStruct(x2d.shape, x2d.dtype),
        grid_spec=pltpu.PrefetchScalarGridSpec(
            num_scalar_prefetch=0,
            grid=(pl.cdiv(rows, tile_rows),),   # ragged last block handled by Pallas
            in_specs=[pl.BlockSpec((tile_rows, cols), lambda i: (i, 0))],
            out_specs=pl.BlockSpec((tile_rows, cols), lambda i: (i, 0)),
        ),
        compiler_params=pltpu.CompilerParams(
            dimension_semantics=("parallel",)),
        cost_estimate=pl.CostEstimate(
            flops=9 * n, transcendentals=n, bytes_accessed=2 * n * itemsize),
    )(x2d)


def gelu(x: jax.Array, *, block_bytes: int = _BLOCK_BYTES,
         compute_dtype=jnp.float32) -> jax.Array:
    """Tanh-approximation GELU (matches the PyTorch module), any shape / dtype.

    block_bytes is the per-buffer HBM<->VMEM tile size, constant in *bytes*
    across dtypes.  compute_dtype=jnp.bfloat16 is an opt-in for bf16 inputs on
    v6e/v7x (halves VALU/EUP work; slight accuracy delta vs the f32 reference).
    """
    orig_shape = x.shape
    n = x.size
    if n == 0:                            # short-circuit: no pointless launch
        return x
    dtype = x.dtype
    itemsize = jnp.dtype(dtype).itemsize
    align = _row_align(dtype)

    if n % _LANES == 0:
        # Fast path: lane-dense [rows, 128] slab; the reshape is free.
        rows = n // _LANES
        max_rows = max(align,
                       (block_bytes // (_LANES * itemsize)) // align * align)
        x2d = x.reshape(rows, _LANES)
        out2d = _launch(x2d, _pick_tile_rows(rows, align, max_rows),
                        compute_dtype)
        return out2d.reshape(orig_shape)

    # Ragged path (n % 128 != 0): view as [R, C] with C the trailing dim
    # (free reshape; C is a full-dim block so it is exempt from the 128-lane
    # rule).  No pad / crop HBM round trips.
    cols = orig_shape[-1] if x.ndim >= 2 else n
    rows = n // cols
    row_bytes = _round_up(cols, _LANES) * itemsize    # VMEM footprint per row
    if row_bytes <= block_bytes:
        max_rows = max(align, (block_bytes // row_bytes) // align * align)
        x2d = x.reshape(rows, cols)
        out2d = _launch(x2d, _pick_tile_rows(rows, align, max_rows),
                        compute_dtype)
        return out2d.reshape(orig_shape)

    # Pathological fallback (e.g. a multi-MiB 1-D array whose length is not a
    # multiple of 128): pad to an aligned [rows, 128] slab and crop afterwards.
    # Costs extra HBM traffic but keeps VMEM bounded; essentially never hit
    # for real activation shapes.
    padded_rows = _round_up(pl.cdiv(n, _LANES), align)
    xp = jnp.pad(x.reshape(-1), (0, padded_rows * _LANES - n))
    max_rows = max(align, (block_bytes // (_LANES * itemsize)) // align * align)
    out2d = _launch(xp.reshape(padded_rows, _LANES),
                    _pick_tile_rows(padded_rows, align, max_rows),
                    compute_dtype)
    return out2d.reshape(-1)[:n].reshape(orig_shape)


def gelu_ref(x):
    return 0.5 * x * (1.0 + jnp.tanh(
        jnp.sqrt(2.0 / jnp.pi) * (x + 0.044715 * jnp.power(x, 3))))


if __name__ == "__main__":
    key = jax.random.PRNGKey(0)
    k1, k2, k3, k4, k5 = jax.random.split(key, 5)

    # Same 1-D input as the torch example: 100 elems, ragged -> single
    # full-dim block, no pad/crop.
    x1 = jnp.linspace(-3.0, 3.0, 100, dtype=jnp.float32)
    # Typical (batch, seq, hidden): 512 elems -> lane-dense fast path.
    x2 = jax.random.normal(k1, (2, 8, 32), dtype=jnp.float32)
    # Aligned 2-D shape, fast path, single block.
    x3 = jax.random.normal(k2, (4, 256), dtype=jnp.float32)
    # bf16 input: dtype-scaled tile rows, f32 compute, bf16 store.
    x4 = jax.random.normal(k3, (16, 64), dtype=jnp.bfloat16)
    # Ragged trailing dim, several rows: [R, C] full-dim-column blocks.
    x5 = jax.random.normal(k4, (3, 5, 20), dtype=jnp.float32)
    # Exercises the balanced 2-way split + masked partial last block.
    x6 = jax.random.normal(k5, (2049, 128), dtype=jnp.float32)
    # Empty input short-circuits without a launch.
    x7 = jnp.zeros((0, 7), dtype=jnp.float32)

    y1 = jax.block_until_ready(gelu(x1))
    y2 = jax.block_until_ready(gelu(x2))
    y3 = jax.block_until_ready(gelu(x3))
    y4 = jax.block_until_ready(gelu(x4))
    y5 = jax.block_until_ready(gelu(x5))
    y6 = jax.block_until_ready(gelu(x6))
    y7 = gelu(x7)

    for xi, yi in ((x1, y1), (x2, y2), (x3, y3), (x4, y4),
                   (x5, y5), (x6, y6), (x7, y7)):
        assert yi.shape == xi.shape and yi.dtype == xi.dtype

    assert jnp.allclose(y1, gelu_ref(x1), atol=1e-6, rtol=1e-6)
    assert jnp.allclose(y2, gelu_ref(x2), atol=1e-6, rtol=1e-6)
    assert jnp.allclose(y3, gelu_ref(x3), atol=1e-6, rtol=1e-6)
    assert jnp.allclose(y4.astype(jnp.float32),
                        gelu_ref(x4.astype(jnp.float32)), atol=3e-2, rtol=3e-2)
    assert jnp.allclose(y5, gelu_ref(x5), atol=1e-6, rtol=1e-6)
    assert jnp.allclose(y6, gelu_ref(x6), atol=1e-6, rtol=1e-6)

    print("KERNEL_OK")
</pallas_src>

<mosaic_0001>
module attributes {stable_mosaic.version = 11 : i64} {
  func.func @_gelu_kernel(%arg0: i32, %arg1: memref<1x100xf32, #tpu.memory_space<vmem>>, %arg2: memref<1x100xf32, #tpu.memory_space<vmem>>) attributes {dimension_semantics = [#tpu.dimension_semantics<parallel>], iteration_bounds = array<i64: 1>, scalar_prefetch = 0 : i64, scratch_operands = 0 : i64, tpu.core_type = #tpu.core_type<tc>, window_params = [{transform_indices = @transform_0, window_bounds = array<i64: 1, 100>}, {transform_indices = @transform_1, window_bounds = array<i64: 1, 100>}]} {
    %c0 = arith.constant 0 : index
    %c0_0 = arith.constant 0 : index
    %0 = vector.load %arg1[%c0, %c0_0] : memref<1x100xf32, #tpu.memory_space<vmem>>, vector<1x100xf32>
    %1 = arith.mulf %0, %0 : vector<1x100xf32>
    %cst = arith.constant 0.0356774069 : f32
    %2 = vector.broadcast %cst : f32 to vector<1x100xf32>
    %3 = arith.mulf %2, %1 : vector<1x100xf32>
    %cst_1 = arith.constant 0.797884583 : f32
    %4 = vector.broadcast %cst_1 : f32 to vector<1x100xf32>
    %5 = arith.addf %4, %3 : vector<1x100xf32>
    %6 = arith.mulf %0, %5 : vector<1x100xf32>
    %7 = math.tanh %6 : vector<1x100xf32>
    %cst_2 = arith.constant 5.000000e-01 : f32
    %8 = vector.broadcast %cst_2 : f32 to vector<1x100xf32>
    %9 = arith.mulf %8, %0 : vector<1x100xf32>
    %10 = arith.mulf %9, %7 : vector<1x100xf32>
    %11 = arith.addf %9, %10 : vector<1x100xf32>
    %c0_3 = arith.constant 0 : index
    %c0_4 = arith.constant 0 : index
    %12 = vector.load %arg2[%c0_3, %c0_4] : memref<1x100xf32, #tpu.memory_space<vmem>>, vector<1x100xf32>
    tpu.vector_store %arg2[%c0_3, %c0_4], %11 {strides = array<i32>} : memref<1x100xf32, #tpu.memory_space<vmem>>, vector<1x100xf32>,
    return
  }
  func.func @transform_0(%arg0: i32) -> (i32, i32) {
    %c0_i32 = arith.constant 0 : i32
    %c0_i32_0 = arith.constant 0 : i32
    return %arg0, %c0_i32 : i32, i32
  }
  func.func @transform_1(%arg0: i32) -> (i32, i32) {
    %c0_i32 = arith.constant 0 : i32
    %c0_i32_0 = arith.constant 0 : i32
    return %arg0, %c0_i32 : i32, i32
  }
}

</mosaic_0001>

<llo_original>
// kernel: tpu_custom_call.1
$region0: #{tpu_custom_call.1}
  #allocation0 [shape = 'u32[]', space=smem, size = 0x4, offset = 0x4, fixed_abs, tag = 'smem constant byte address 0x4 - core index']
  #allocation1 [shape = 'u32[144,128]{1,0:T(1,128)}', space=vmem, size = 0x12000, scoped, tag = 'internal scratch']
  %s0 = inlined_call_operand.hbm [shape: f32[1,100], index: 0, kind: input, shape index: {}]
  %s1 = inlined_call_operand.hbm [shape: f32[1,100], index: 1, kind: output, shape index: {}]
  %s2 = sld [smem:[#allocation0]]
  $region18: #{tpu_custom_call.1} parent=0
    _
  %s4 = ssub.s32 1, %s2
  %s5 = scalar_select 0, %s4, %s2
  $region1: #{tpu_custom_call.1} parent=0
    #allocation2 [shape = 'u8[512]{0}', space=vmem, size = 0x400, scoped, tag = 'input window, operand 0, single buffered']
    #allocation3 [shape = 's32[1]{0}', space=sflag, size = 0x4, scoped, tag = 'scoped memory for tpu_custom_call.1']
    #allocation4 [shape = 's32[1]{0}', space=sflag, size = 0x4, scoped, tag = 'scoped memory for tpu_custom_call.1']
    #allocation5 [shape = 'u8[512]{0}', space=vmem, size = 0x400, scoped, tag = 'output window, operand 0, single buffered']
    %6 = vsyncpa [#allocation3], 0
    %7 = vsyncpa [#allocation4], 0
    // Predicated region
    $region2: #{tpu_custom_call.1} parent=1 // pred_check
      _
    $region3: #{tpu_custom_call.1} parent=1 // pred_check_branch
      %9 = sbr.rel (0) target = $region5
    $region4: #{tpu_custom_call.1} parent=1 // pred_region
      %s11 = ssub.s32 16, 16
      %12 = vsyncadd [#allocation3], %s11
      %s14 = sshll.u32 [#allocation2], 4
      %s15 = int_to_ptr.vmem [resolvable:$true] %s14
      %17 = dma.hbm_to_vmem [thread:$0]  %s0, 16, %s15, [#allocation3]
    $region5: #{tpu_custom_call.1} parent=1 // pred_fallthru
      _
    // Predicated region
    $region6: #{tpu_custom_call.1} parent=1 // pred_check
      _
    $region7: #{tpu_custom_call.1} parent=1 // pred_check_branch
      %19 = sbr.rel (0) target = $region9
    $region8: #{tpu_custom_call.1} parent=1 // pred_region
      %20 = dma.done [#allocation3], 16
    $region9: #{tpu_custom_call.1} parent=1 // pred_fallthru
      _
    %v21 = vld [vmem:[#allocation2] sm:$0x1]
    %v22 = vmul.f32 %v21, %v21
    %v23 = vmul.f32 %v22, 0.035677407
    %v24 = vadd.f32 %v23, 0.7978846
    %v25 = vmul.f32 %v21, %v24
    %v26 = vtanh.pop %v25
    %v27 = vmul.f32 %v21, 0.5
    %v28 = vmul.f32 %v27, %v26
    %v29 = vadd.f32 %v27, %v28
    %vm30 = vcmask 811008
    %31 = vst.msk [vmem:[#allocation5] sm:$0x1] %vm30, %v29
    // Predicated region
    $region10: #{tpu_custom_call.1} parent=1 // pred_check
      _
    $region11: #{tpu_custom_call.1} parent=1 // pred_check_branch
      %33 = sbr.rel (0) target = $region13
    $region12: #{tpu_custom_call.1} parent=1 // pred_region
      %s35 = ssub.s32 16, 16
      %36 = vsyncadd [#allocation4], %s35
      %s38 = sshll.u32 [#allocation5], 4
      %s39 = int_to_ptr.vmem [resolvable:$true] %s38
      %41 = dma.vmem_to_hbm [thread:$0]  %s39, 16, %s1, [#allocation4]
    $region13: #{tpu_custom_call.1} parent=1 // pred_fallthru
      _
    // Predicated region
    $region14: #{tpu_custom_call.1} parent=1 // pred_check
      _
    $region15: #{tpu_custom_call.1} parent=1 // pred_check_branch
      %43 = sbr.rel (0) target = $region17
    $region16: #{tpu_custom_call.1} parent=1 // pred_region
      %44 = dma.done [#allocation4], 16
    $region17: #{tpu_custom_call.1} parent=1 // pred_fallthru
      _
    %45 = vsyncpa [#allocation3], 1
    %46 = vsyncpa [#allocation4], 1

</llo_original>
